<compile_context>
chip_gen: v7x
topology: tpu7x:2x2x1
jax: 0.10.0
libtpu: 0.0.40
codegen_flags: <defaults>
</compile_context>

<pallas_src>
import jax
import jax.numpy as jnp
from jax.experimental import pallas as pl
from jax.experimental.pallas import tpu as pltpu


def time_att_kernel(ht_ref, w_ref, att_ref):
    # ht_ref: (TB, L, H), w_ref: (L, H), att_ref: (TB, L)
    ht = ht_ref[...].astype(jnp.float32)            # widen bf16 input on load
    w = w_ref[...].astype(jnp.float32)

    # Weighted reduction over the hidden dim (lane axis, H<=128): VPU + XLU.
    # Deliberately kept off the MXU (K=32, N=1 matvec would waste it).
    s = jnp.sum(ht * w[None, :, :], axis=2)         # (TB, L)

    # Numerically stable softmax over the lag axis, per batch row.
    m = jnp.max(s, axis=1, keepdims=True)           # (TB, 1)
    e = jnp.exp(s - m)                              # (TB, L)
    denom = jnp.sum(e, axis=1, keepdims=True)       # (TB, 1)
    # Exact divide: rows must sum to 1 (approx EUP recip left ~2e-3 error on
    # the row sum, which tripped the normalization check). HBM-bound anyway.
    att_ref[...] = (e / denom).astype(att_ref.dtype)


def _pick_batch_tile(B, L, H, itemsize):
    """Batch tile: big enough to amortize per-step overhead, small enough to
    stay well under the scoped-VMEM limit on every generation, and split so
    the grid has >=2 steps when the batch is large enough (v7x megacore)."""
    per_row = max(1, L * H * itemsize)              # bytes per batch row
    budget_bytes = 4 * 1024 * 1024                  # per tile; x2 double-buffered
    tb = (budget_bytes // per_row) // 8 * 8
    tb = max(8, min(tb, 4096))
    if tb >= B:
        if B >= 16:
            # Whole batch would fit in one tile: split into >=2 grid steps so
            # both v7x TensorCores get work and DMA/compute overlap.
            tb = max(8, pl.cdiv(pl.cdiv(B, 2), 8) * 8)
        else:
            tb = B                                  # tiny batch: full-extent block
    return tb


def _time_att_forward(ht, W):
    B, L, H = ht.shape
    assert W.shape == (L, H)

    tb = _pick_batch_tile(B, L, H, jnp.dtype(ht.dtype).itemsize)
    grid = (pl.cdiv(B, tb),)

    cost = pl.CostEstimate(
        flops=3 * B * L * H,
        transcendentals=B * L,
        bytes_accessed=jnp.dtype(ht.dtype).itemsize * B * L * H
        + 4 * (L * H + B * L),
    )

    att = pl.pallas_call(
        time_att_kernel,
        out_shape=jax.ShapeDtypeStruct((B, L), jnp.float32),
        grid=grid,
        in_specs=[
            pl.BlockSpec((tb, L, H), lambda i: (i, 0, 0)),   # native layout, no transpose
            pl.BlockSpec((L, H), lambda i: (0, 0)),          # constant -> VMEM resident
        ],
        out_specs=pl.BlockSpec((tb, L), lambda i: (i, 0)),
        compiler_params=pltpu.CompilerParams(
            dimension_semantics=("parallel",),               # shard batch across TCs (v7x)
            vmem_limit_bytes=32 * 1024 * 1024,               # safe on v5e/v6e/v7x
        ),
        cost_estimate=cost,
    )(ht, W)

    return att


time_att_forward = jax.jit(_time_att_forward)


def xavier_normal(key, lag, n_hidden):
    # torch.nn.init.xavier_normal_: std = sqrt(2 / (fan_in + fan_out))
    std = (2.0 / (lag + n_hidden)) ** 0.5
    return std * jax.random.normal(key, (lag, n_hidden), dtype=jnp.float32)


if __name__ == "__main__":
    B, LAG, HIDDEN = 2, 8, 32

    key = jax.random.PRNGKey(0)
    k_w, k_x = jax.random.split(key)

    W = xavier_normal(k_w, LAG, HIDDEN)
    ht = jax.random.normal(k_x, (B, LAG, HIDDEN), dtype=jnp.float32)

    att = time_att_forward(ht, W)
    att = jax.block_until_ready(att)

    # Reference check in plain JAX.
    s_ref = jnp.sum(ht * W[None, :, :], axis=2)
    att_ref = jax.nn.softmax(s_ref, axis=1)
    assert att.shape == (B, LAG)
    assert jnp.allclose(att, att_ref, atol=1e-3, rtol=1e-3)
    assert jnp.allclose(jnp.sum(att, axis=1), jnp.ones((B,)), atol=1e-3)

    print("KERNEL_OK")
</pallas_src>

<mosaic_0001>
module attributes {stable_mosaic.version = 11 : i64} {
  func.func @time_att_kernel(%arg0: i32, %arg1: memref<2x8x32xf32, #tpu.memory_space<vmem>>, %arg2: memref<8x32xf32, #tpu.memory_space<vmem>>, %arg3: memref<2x8xf32, #tpu.memory_space<vmem>>) attributes {dimension_semantics = [#tpu.dimension_semantics<parallel>], iteration_bounds = array<i64: 1>, scalar_prefetch = 0 : i64, scratch_operands = 0 : i64, tpu.core_type = #tpu.core_type<tc>, window_params = [{transform_indices = @transform_0, window_bounds = array<i64: 2, 8, 32>}, {pipeline_mode = #tpu.pipeline_mode<synchronous>, transform_indices = @transform_1, window_bounds = array<i64: 8, 32>}, {transform_indices = @transform_2, window_bounds = array<i64: 2, 8>}]} {
    %c0 = arith.constant 0 : index
    %c0_0 = arith.constant 0 : index
    %c0_1 = arith.constant 0 : index
    %0 = vector.load %arg1[%c0, %c0_0, %c0_1] : memref<2x8x32xf32, #tpu.memory_space<vmem>>, vector<2x8x32xf32>
    %c0_2 = arith.constant 0 : index
    %c0_3 = arith.constant 0 : index
    %1 = vector.load %arg2[%c0_2, %c0_3] : memref<8x32xf32, #tpu.memory_space<vmem>>, vector<8x32xf32>
    %2 = vector.shape_cast %1 : vector<8x32xf32> to vector<1x8x32xf32>
    %3 = vector.broadcast %2 : vector<1x8x32xf32> to vector<2x8x32xf32>
    %4 = arith.mulf %0, %3 : vector<2x8x32xf32>
    %cst = arith.constant dense<0.000000e+00> : vector<2x8xf32>
    %5 = vector.multi_reduction <add>, %4, %cst [2] : vector<2x8x32xf32> to vector<2x8xf32>
    %cst_4 = arith.constant dense<0xFF800000> : vector<2xf32>
    %6 = vector.multi_reduction <maximumf>, %5, %cst_4 [1] : vector<2x8xf32> to vector<2xf32>
    %7 = vector.shape_cast %6 : vector<2xf32> to vector<2x1xf32>
    %8 = vector.broadcast %7 : vector<2x1xf32> to vector<2x8xf32>
    %9 = arith.subf %5, %8 : vector<2x8xf32>
    %10 = math.exp %9 : vector<2x8xf32>
    %cst_5 = arith.constant dense<0.000000e+00> : vector<2xf32>
    %11 = vector.multi_reduction <add>, %10, %cst_5 [1] : vector<2x8xf32> to vector<2xf32>
    %12 = vector.shape_cast %11 : vector<2xf32> to vector<2x1xf32>
    %13 = vector.broadcast %12 : vector<2x1xf32> to vector<2x8xf32>
    %14 = arith.divf %10, %13 : vector<2x8xf32>
    %c0_6 = arith.constant 0 : index
    %c0_7 = arith.constant 0 : index
    %15 = vector.load %arg3[%c0_6, %c0_7] : memref<2x8xf32, #tpu.memory_space<vmem>>, vector<2x8xf32>
    tpu.vector_store %arg3[%c0_6, %c0_7], %14 {strides = array<i32>} : memref<2x8xf32, #tpu.memory_space<vmem>>, vector<2x8xf32>,
    return
  }
  func.func @transform_0(%arg0: i32) -> (i32, i32, i32) {
    %c0_i32 = arith.constant 0 : i32
    %c0_i32_0 = arith.constant 0 : i32
    %c0_i32_1 = arith.constant 0 : i32
    return %arg0, %c0_i32, %c0_i32_0 : i32, i32, i32
  }
  func.func @transform_1(%arg0: i32) -> (i32, i32) {
    %c0_i32 = arith.constant 0 : i32
    %c0_i32_0 = arith.constant 0 : i32
    %c0_i32_1 = arith.constant 0 : i32
    return %c0_i32, %c0_i32_0 : i32, i32
  }
  func.func @transform_2(%arg0: i32) -> (i32, i32) {
    %c0_i32 = arith.constant 0 : i32
    %c0_i32_0 = arith.constant 0 : i32
    return %arg0, %c0_i32 : i32, i32
  }
}

</mosaic_0001>

<llo_original>
// kernel: _time_att_forward.1
$region0: #{_time_att_forward.1}
  #allocation0 [shape = 'u32[]', space=smem, size = 0x4, offset = 0x4, fixed_abs, tag = 'smem constant byte address 0x4 - core index']
  #allocation1 [shape = 'u32[144,128]{1,0:T(1,128)}', space=vmem, size = 0x12000, scoped, tag = 'internal scratch']
  %s0 = inlined_call_operand.hbm [shape: f32[2,8,32], index: 0, kind: input, shape index: {}]
  %s1 = inlined_call_operand.hbm [shape: f32[8,32], index: 1, kind: input, shape index: {}]
  %s2 = inlined_call_operand.hbm [shape: f32[2,8], index: 2, kind: output, shape index: {}]
  %s3 = sld [smem:[#allocation0]]
  $region26: #{_time_att_forward.1} parent=0
    _
  %s5 = ssub.s32 1, %s3
  %s6 = scalar_select 0, %s5, %s3
  $region1: #{_time_att_forward.1} parent=0
    #allocation2 [shape = 'u8[8192]{0}', space=vmem, size = 0x2000, scoped, tag = 'input window, operand 0, single buffered']
    #allocation3 [shape = 's32[1]{0}', space=sflag, size = 0x4, scoped, tag = 'scoped memory for _time_att_forward.1']
    #allocation4 [shape = 's32[1]{0}', space=sflag, size = 0x4, scoped, tag = 'scoped memory for _time_att_forward.1']
    #allocation5 [shape = 'u8[4096]{0}', space=vmem, size = 0x1000, scoped, tag = 'input window, operand 1, single buffered']
    #allocation6 [shape = 's32[1]{0}', space=sflag, size = 0x4, scoped, tag = 'scoped memory for _time_att_forward.1']
    #allocation7 [shape = 'u8[1024]{0}', space=vmem, size = 0x400, scoped, tag = 'output window, operand 0, single buffered']
    %7 = vsyncpa [#allocation3], 0
    %8 = vsyncpa [#allocation6], 0
    %9 = vsyncpa [#allocation4], 0
    // Predicated region
    $region2: #{_time_att_forward.1} parent=1 // pred_check
      _
    $region3: #{_time_att_forward.1} parent=1 // pred_check_branch
      %11 = sbr.rel (0) target = $region5
    $region4: #{_time_att_forward.1} parent=1 // pred_region
      %s13 = ssub.s32 256, 256
      %14 = vsyncadd [#allocation3], %s13
      %s15 = sshll.u32 [#allocation2], 4
      %s16 = int_to_ptr.vmem [resolvable:$true] %s15
      %21 = dma.hbm_to_vmem [thread:$0]  %s0, 256, %s16, [#allocation3], 128, 128, 8
    $region5: #{_time_att_forward.1} parent=1 // pred_fallthru
      _
    // Predicated region
    $region6: #{_time_att_forward.1} parent=1 // pred_check
      _
    $region7: #{_time_att_forward.1} parent=1 // pred_check_branch
      %23 = sbr.rel (0) target = $region9
    $region8: #{_time_att_forward.1} parent=1 // pred_region
      %s25 = ssub.s32 128, 128
      %26 = vsyncadd [#allocation6], %s25
      %s28 = sshll.u32 [#allocation5], 4
      %s29 = int_to_ptr.vmem [resolvable:$true] %s28
      %31 = dma.hbm_to_vmem [thread:$0]  %s1, 128, %s29, [#allocation6]
    $region9: #{_time_att_forward.1} parent=1 // pred_fallthru
      _
    // Predicated region
    $region10: #{_time_att_forward.1} parent=1 // pred_check
      _
    $region11: #{_time_att_forward.1} parent=1 // pred_check_branch
      %33 = sbr.rel (0) target = $region13
    $region12: #{_time_att_forward.1} parent=1 // pred_region
      %34 = dma.done [#allocation3], 256
    $region13: #{_time_att_forward.1} parent=1 // pred_fallthru
      _
    // Predicated region
    $region14: #{_time_att_forward.1} parent=1 // pred_check
      _
    $region15: #{_time_att_forward.1} parent=1 // pred_check_branch
      %36 = sbr.rel (0) target = $region17
    $region16: #{_time_att_forward.1} parent=1 // pred_region
      %37 = dma.done [#allocation6], 128
    $region17: #{_time_att_forward.1} parent=1 // pred_fallthru
      _
    %v38 = vld [vmem:[#allocation2] sm:$0xff]
    %v39 = vld [vmem:[#allocation2 + $0x8] sm:$0xff]
    %v40 = vld [vmem:[#allocation5] sm:$0xff]
    %v41 = vmul.f32 %v38, %v40
    %v42 = vmul.f32 %v39, %v40
    %vm43 = vcmask 261120
    %v44 = vsel %vm43, %v41, 0.0
    %45 = vadd.xlane.f32.xlu0 %v44
    %v46 = vpop.xlane.xlu0 %45
    %v47 = vsel %vm43, %v42, 0.0
    %48 = vadd.xlane.f32.xlu0 %v47
    %v49 = vpop.xlane.xlu0 %48
    %v52 = vlaneseq
    %v53 = vand.u32 %v52, 127
    %v54 = vlaneseq
    %v55 = vshrl.u32 %v54, 7
    %v56 = vsub.s32 %v53, %v55
    %v57 = vrot.slane %v46, %v56
    %v58 = vlaneseq
    %v59 = vshrl.u32 %v58, 7
    %v60 = vsub.s32 %v53, %v59
    %v61 = vrot.slane %v49, %v60
    %vm62 = vcmask 1041409
    %v63 = vsel %vm62, %v61, %v57
    %vm65 = vcmask 58368
    %v66 = vsel %vm65, %v63, -inf
    %67 = vmax.xlane.f32.xlu0 %v66
    %v68 = vpop.xlane.xlu0 %67
    %v70 = vlaneseq
    %v71 = vshrl.u32 %v70, 7
    %v72 = vsub.s32 0, %v71
    %v73 = vrot.slane %v68, %v72
    %v74 = vlaneseq
    %v75 = vshrl.u32 %v74, 7
    %v76 = vsub.s32 1, %v75
    %v77 = vrot.slane %v68, %v76
    %v80 = vsub.f32 %v46, %v73
    %v81 = vsub.f32 %v49, %v77
    %v82 = vmul.f32 %v80, 1.442695
    %v83 = vpow.pop %v82
    %v84 = vmul.f32 %v81, 1.442695
    %v85 = vpow.pop %v84
    %88 = vset.pattern.permute.xlu0 0
    %89 = vperm.xlu0 %88, %v83
    %v90 = vpop.permute.xlu0 %89
    %91 = vset.pattern.permute.xlu0 0
    %92 = vperm.xlu0 %91, %v85
    %v93 = vpop.permute.xlu0 %92
    %v94 = vlaneseq
    %v95 = vshrl.u32 %v94, 7
    %v96 = vsub.s32 %v53, %v95
    %v97 = vrot.slane %v90, %v96
    %v98 = vlaneseq
    %v99 = vshrl.u32 %v98, 7
    %v100 = vsub.s32 %v53, %v99
    %v101 = vrot.slane %v93, %v100
    %v102 = vsel %vm62, %v101, %v97
    %v104 = vsel %vm65, %v102, 0.0
    %105 = vadd.xlane.f32.xlu0 %v104
    %v106 = vpop.xlane.xlu0 %105
    %v108 = vlaneseq
    %v109 = vshrl.u32 %v108, 7
    %v110 = vsub.s32 0, %v109
    %v111 = vrot.slane %v106, %v110
    %v112 = vlaneseq
    %v113 = vshrl.u32 %v112, 7
    %v114 = vsub.s32 1, %v113
    %v115 = vrot.slane %v106, %v114
    %v118 = vrcp.pop %v111
    %v119 = vmul.f32 %v83, %v118
    %v120 = vrcp.pop %v115
    %v121 = vmul.f32 %v85, %v120
    %124 = vset.pattern.permute.xlu0 0
    %125 = vperm.xlu0 %124, %v119
    %v126 = vpop.permute.xlu0 %125
    %127 = vset.pattern.permute.xlu0 0
    %128 = vperm.xlu0 %127, %v121
    %v129 = vpop.permute.xlu0 %128
    %v130 = vlaneseq
    %v131 = vshrl.u32 %v130, 7
    %v132 = vsub.s32 %v53, %v131
    %v133 = vrot.slane %v126, %v132
    %v134 = vlaneseq
    %v135 = vshrl.u32 %v134, 7
    %v136 = vsub.s32 %v53, %v135
    %v137 = vrot.slane %v129, %v136
    %v138 = vsel %vm62, %v137, %v133
    %140 = vst.msk [vmem:[#allocation7] sm:$0x3] %vm65, %v138
    // Predicated region
    $region18: #{_time_att_forward.1} parent=1 // pred_check
      _
    $region19: #{_time_att_forward.1} parent=1 // pred_check_branch
      %142 = sbr.rel (0) target = $region21
    $region20: #{_time_att_forward.1} parent=1 // pred_region
      %s144 = ssub.s32 32, 32
      %145 = vsyncadd [#allocation4], %s144
      %s147 = sshll.u32 [#allocation7], 4
      %s148 = int_to_ptr.vmem [resolvable:$true] %s147
      %150 = dma.vmem_to_hbm [thread:$0]  %s148, 32, %s2, [#allocation4]
    $region21: #{_time_att_forward.1} parent=1 // pred_fallthru
      _
    // Predicated region
    $region22: #{_time_att_forward.1} parent=1 // pred_check
      _
    $region23: #{_time_att_forward.1} parent=1 // pred_check_branch
      %152 = sbr.rel (0) target = $region25
    $region24: #{_time_att_forward.1} parent=1 // pred_region
      %153 = dma.done [#allocation4], 32
    $region25: #{_time_att_forward.1} parent=1 // pred_fallthru
      _
    %154 = vsyncpa [#allocation3], 1
    %155 = vsyncpa [#allocation6], 1
    %156 = vsyncpa [#allocation4], 1

</llo_original>
